<compile_context>
chip_gen: v7x
topology: tpu7x:2x2x1
jax: 0.10.0
libtpu: 0.0.40
codegen_flags: <defaults>
</compile_context>

<pallas_src>
from functools import partial

import numpy as np
import jax
import jax.numpy as jnp
from jax.experimental import pallas as pl
from jax.experimental.pallas import tpu as pltpu


# --------------------------------------------------------------------------- #
# VMEM budgeting helpers
# --------------------------------------------------------------------------- #
def _vmem_budget():
    """(physical VMEM bytes, usable budget).  64 MiB on v7x, 128 MiB on
    v5e/v6e; keep ~25% headroom for compiler-internal scratch / pipelining."""
    try:
        phys = int(pltpu.get_tpu_info().vmem_capacity_bytes)
    except Exception:
        phys = 64 << 20                       # conservative default (v7x)
    return phys, (phys * 3) // 4


def _vmem_limit(budget, need):
    # Always set explicitly: v5e's default scoped limit is only 16 MiB.
    return int(min(budget, max(need, 24 << 20)))


def _pick_block_rows(batch, n_elems, itemsize, budget_bytes):
    """Rows packed per block for the row-resident fast path, or None when even
    the minimum legal block (8 rows, or the whole batch if smaller) would not
    fit the VMEM budget -> caller uses the N-tiled two-phase fallback.

    Footprint per row: double-buffered in + out slabs plus ~2 whole-block f32
    temporaries the kernel keeps live (xf and x - mean)."""
    per_row = n_elems * (4 * itemsize + 2 * 4)
    max_rows = max(0, (budget_bytes - (1 << 20)) // max(per_row, 1))
    min_rows = batch if batch <= 8 else 8
    if max_rows < min_rows:
        return None
    if batch <= 8:
        # Tiny batch: single block; block dim == full batch dim satisfies the
        # (8, 128) rule via the "full array dim" exception.
        # TODO(synk): on v7x a single grid step idles one TensorCore for
        # small-B / wide-row shapes; an N-split with a partial-sum epilogue
        # would recover it.
        return batch
    bt = min(max_rows, batch)
    if batch >= 16:
        bt = min(bt, -(-batch // 2))          # keep >= 2 grid steps (v7x megacore)
    return max(8, (bt // 8) * 8)


# --------------------------------------------------------------------------- #
# Fast path: whole (flattened) row resident in VMEM, one HBM sweep
# --------------------------------------------------------------------------- #
def _resident_kernel(lim_ref, x_ref, o_ref, *, eps, bt, single_block, zero_padded):
    """One grid step == one block of bt batch rows, flattened to (bt, N).

    lim_ref : VMEM (Bpad, 1) int32 -- valid element count per row (= len[b]*D),
              resident across all grid steps (constant index_map).
    x_ref   : VMEM (bt, N)         -- input rows (N = T*D, lane-dense).
    o_ref   : VMEM (bt, N)         -- normalized output rows.
    """
    if single_block:
        lim = lim_ref[...]                                     # (bt, 1)
    else:
        b0 = pl.multiple_of(pl.program_id(0) * bt, 8)
        lim = lim_ref[pl.ds(b0, bt), :]                        # resident slice

    xf = x_ref[...].astype(jnp.float32)                        # (bt, N)
    # Clamp only deviates from the PyTorch reference for degenerate rows with
    # input_len == 0 (reference -> NaN); it also protects ragged overhang rows.
    denom = jnp.maximum(lim.astype(jnp.float32), 1.0)          # (bt, 1)

    if zero_padded:
        # Padded positions are exactly 0 (pad_sequence), so unmasked sums equal
        # the masked ones -- skips iota/compare/select (VALU relief on v7x).
        mean = jnp.sum(xf, axis=1, keepdims=True) / denom
        ex2 = jnp.sum(xf * xf, axis=1, keepdims=True) / denom
        var = jnp.maximum(ex2 - mean * mean, 0.0)
        d = xf - mean
    else:
        # In-kernel valid mask: flattened index e = t*D + d is valid iff
        # e < len[b]*D.  True two-pass variance over the VMEM-resident block
        # (no extra HBM traffic; avoids E[x^2] - mean^2 cancellation).
        col = jax.lax.broadcasted_iota(jnp.int32, xf.shape, 1)
        valid = col < lim
        mean = jnp.sum(jnp.where(valid, xf, 0.0), axis=1, keepdims=True) / denom
        d = xf - mean
        var = jnp.sum(jnp.where(valid, d * d, 0.0), axis=1, keepdims=True) / denom

    inv = jax.lax.rsqrt(var + eps)                             # EUP rsqrt
    # Normalization applied to ALL positions (incl. padded), like the module.
    o_ref[...] = (d * inv).astype(o_ref.dtype)


def _masked_ln_resident(x2, lim, eps, bt, budget, zero_padded):
    B, N = x2.shape
    itemsize = x2.dtype.itemsize
    nb = -(-B // bt)
    b_pad = nb * bt

    # Pad ONLY the tiny per-row limit vector (so the resident slice can never
    # go out of bounds); x itself stays unpadded -- Pallas masks the ragged
    # last batch block (overhang rows are computed but never written back).
    if b_pad != B:
        lim = jnp.concatenate(
            [lim, jnp.full((b_pad - B, 1), N, jnp.int32)], axis=0)

    # VMEM: double-buffered in + out slabs plus ~2 whole-block f32 temporaries.
    slab = bt * N * itemsize
    need = 4 * slab + 2 * bt * N * 4 + (1 << 20)

    kernel = partial(_resident_kernel, eps=float(eps), bt=bt,
                     single_block=(nb == 1), zero_padded=zero_padded)

    return pl.pallas_call(
        kernel,
        out_shape=jax.ShapeDtypeStruct((B, N), x2.dtype),
        grid_spec=pltpu.PrefetchScalarGridSpec(
            num_scalar_prefetch=0,
            grid=(nb,),
            in_specs=[
                # Constant index_map -> limits stay VMEM-resident (one DMA total).
                pl.BlockSpec((b_pad, 1), lambda g: (0, 0)),
                pl.BlockSpec((bt, N), lambda g: (g, 0)),
            ],
            out_specs=pl.BlockSpec((bt, N), lambda g: (g, 0)),
        ),
        compiler_params=pltpu.CompilerParams(
            dimension_semantics=("parallel",),   # shards batch across TCs (v7x)
            vmem_limit_bytes=_vmem_limit(budget, need),
        ),
    )(lim, x2)


# --------------------------------------------------------------------------- #
# Fallback: N-tiled two-phase (stats accumulation + normalize re-sweep)
# --------------------------------------------------------------------------- #
def _stats_kernel(lim_ref, x_ref, mean_ref, inv_ref, sum_ref, sq_ref, *, eps, tn):
    n = pl.program_id(1)

    @pl.when(n == 0)
    def _():
        sum_ref[...] = jnp.zeros_like(sum_ref)
        sq_ref[...] = jnp.zeros_like(sq_ref)

    lim = lim_ref[...]                                         # (bt, 1)
    xf = x_ref[...].astype(jnp.float32)                        # (bt, tn)
    # Always mask here: ragged N / batch-overhang blocks may contain garbage.
    col = jax.lax.broadcasted_iota(jnp.int32, xf.shape, 1) + n * tn
    xm = jnp.where(col < lim, xf, 0.0)
    sum_ref[...] += jnp.sum(xm, axis=1, keepdims=True)
    sq_ref[...] += jnp.sum(xm * xm, axis=1, keepdims=True)

    @pl.when(n == pl.num_programs(1) - 1)
    def _():
        denom = jnp.maximum(lim.astype(jnp.float32), 1.0)
        mean = sum_ref[...] / denom
        # TODO(synk): one-pass E[x^2]-mean^2 can cancel when |mean| >> sigma;
        # a third sweep (re-reading x) would fix it at ~1.5x extra read traffic.
        var = jnp.maximum(sq_ref[...] / denom - mean * mean, 0.0)
        mean_ref[...] = mean
        inv_ref[...] = jax.lax.rsqrt(var + eps)


def _norm_kernel(mean_ref, inv_ref, x_ref, o_ref):
    xf = x_ref[...].astype(jnp.float32)
    o_ref[...] = ((xf - mean_ref[...]) * inv_ref[...]).astype(o_ref.dtype)


def _masked_ln_two_phase(x2, lim, eps, budget, bt=None, tn=None):
    """Used when whole rows don't fit the VMEM budget (wide T*D, e.g. v7x's
    64 MiB): pass 1 accumulates sum / sum-of-squares over an N-tiled grid,
    pass 2 re-reads x and normalizes (~1.5x read traffic vs the fast path)."""
    B, N = x2.shape
    itemsize = x2.dtype.itemsize
    if bt is None:
        bt = B if B <= 8 else 8
    if tn is None:
        per_elem = 4 * itemsize + 2 * 4       # in/out double buffers + f32 temp
        cap = max(128, (budget - (2 << 20)) // (bt * per_elem))
        tn = int(min(N, max(128, (cap // 128) * 128)))
    nb = -(-B // bt)
    nn = -(-N // tn)

    need = bt * tn * (4 * itemsize + 2 * 4) + (1 << 20)
    limit = _vmem_limit(budget, need)

    stats_kernel = partial(_stats_kernel, eps=float(eps), tn=tn)
    mean, inv = pl.pallas_call(
        stats_kernel,
        out_shape=(jax.ShapeDtypeStruct((B, 1), jnp.float32),
                   jax.ShapeDtypeStruct((B, 1), jnp.float32)),
        grid_spec=pltpu.PrefetchScalarGridSpec(
            num_scalar_prefetch=0,
            grid=(nb, nn),
            in_specs=[
                pl.BlockSpec((bt, 1), lambda b, n: (b, 0)),
                pl.BlockSpec((bt, tn), lambda b, n: (b, n)),
            ],
            out_specs=(pl.BlockSpec((bt, 1), lambda b, n: (b, 0)),
                       pl.BlockSpec((bt, 1), lambda b, n: (b, 0))),
            scratch_shapes=[pltpu.VMEM((bt, 1), jnp.float32),
                            pltpu.VMEM((bt, 1), jnp.float32)],
        ),
        compiler_params=pltpu.CompilerParams(
            dimension_semantics=("parallel", "arbitrary"),
            vmem_limit_bytes=limit,
        ),
    )(lim, x2)

    return pl.pallas_call(
        _norm_kernel,
        out_shape=jax.ShapeDtypeStruct((B, N), x2.dtype),
        grid_spec=pltpu.PrefetchScalarGridSpec(
            num_scalar_prefetch=0,
            grid=(nb, nn),
            in_specs=[
                pl.BlockSpec((bt, 1), lambda b, n: (b, 0)),
                pl.BlockSpec((bt, 1), lambda b, n: (b, 0)),
                pl.BlockSpec((bt, tn), lambda b, n: (b, n)),
            ],
            out_specs=pl.BlockSpec((bt, tn), lambda b, n: (b, n)),
        ),
        compiler_params=pltpu.CompilerParams(
            dimension_semantics=("parallel", "parallel"),
            vmem_limit_bytes=limit,
        ),
    )(mean, inv, x2)


# --------------------------------------------------------------------------- #
# Public wrapper
# --------------------------------------------------------------------------- #
def masked_layer_norm(x, mask, input_len_batch, eps=1e-5, block_rows=None,
                      assume_zero_padded=False, force_two_phase=False,
                      n_block=None):
    """Pallas implementation of MaskedLayerNorm.forward.

    x                  : (B, T, D) float array
    mask               : (B, T) bool, True = padded.  Accepted for API parity;
                         validity is derived from `input_len_batch` (the
                         module's pad_sequence usage: mask[b,t] == t >= len[b]).
    input_len_batch    : (B,) valid positions per batch element
    assume_zero_padded : skip in-kernel mask ops (padded positions must be 0)
    force_two_phase    : force the N-tiled fallback (normally auto-selected
                         only when rows do not fit the VMEM budget)
    """
    del mask  # validity derived from input_len_batch (see docstring)
    B, T, D = x.shape
    N = T * D
    x2 = x.reshape(B, N)                          # lane-dense last dim
    # NOTE: int32 len*D only overflows if T*D approaches 2^31 (unchecked).
    lim = (input_len_batch.astype(jnp.int32) * D).reshape(B, 1)

    _, budget = _vmem_budget()
    bt = block_rows if block_rows is not None else _pick_block_rows(
        B, N, x.dtype.itemsize, budget)

    if force_two_phase or bt is None:
        out2 = _masked_ln_two_phase(x2, lim, eps, budget, tn=n_block)
    else:
        out2 = _masked_ln_resident(x2, lim, eps, bt, budget, assume_zero_padded)
    return out2.reshape(B, T, D)


def masked_layer_norm_ref(x, mask, input_len_batch, eps=1e-5):
    """Pure-JAX reference mirroring the PyTorch forward exactly."""
    B, T, D = x.shape
    valid = jnp.logical_not(mask)[..., None].astype(x.dtype)        # (B, T, 1)
    denom = input_len_batch.astype(jnp.float32) * D                 # (B,)
    mean = jnp.sum(x * valid, axis=(1, 2)) / denom                  # (B,)
    mean_e = mean[:, None, None]
    var = jnp.sum((x - mean_e) ** 2 * valid, axis=(1, 2)) / denom   # (B,)
    return (x - mean_e) / jnp.sqrt(var[:, None, None] + eps)


if __name__ == "__main__":
    key = jax.random.PRNGKey(0)
    eps = 1e-5
    kx, kl = jax.random.split(key)

    # --- main check: small shape, row-resident fast path ---------------------
    B, T, D = 2, 8, 32
    x = jax.random.normal(kx, (B, T, D), dtype=jnp.float32)
    input_len = jnp.array([8, 5], dtype=jnp.int32)
    mask = jnp.arange(T)[None, :] >= input_len[:, None]   # True = padded
    out = jax.block_until_ready(masked_layer_norm(x, mask, input_len, eps=eps))
    ref = masked_layer_norm_ref(x, mask, input_len, eps=eps)
    np.testing.assert_allclose(np.asarray(out), np.asarray(ref),
                               rtol=2e-5, atol=2e-5)

    # --- zero-padded fast path (v7x VALU-trimmed variant) ---------------------
    x_zp = x * jnp.logical_not(mask)[..., None].astype(x.dtype)
    out_zp = jax.block_until_ready(
        masked_layer_norm(x_zp, mask, input_len, eps=eps, assume_zero_padded=True))
    ref_zp = masked_layer_norm_ref(x_zp, mask, input_len, eps=eps)
    np.testing.assert_allclose(np.asarray(out_zp), np.asarray(ref_zp),
                               rtol=2e-5, atol=2e-5)

    # --- multi-block batch: ragged last block, resident limits ----------------
    B2, T2, D2 = 10, 8, 32
    x_b = jax.random.normal(kl, (B2, T2, D2), dtype=jnp.float32)
    len_b = jnp.array([8, 5, 3, 8, 7, 1, 8, 6, 2, 4], dtype=jnp.int32)
    mask_b = jnp.arange(T2)[None, :] >= len_b[:, None]
    out_b = jax.block_until_ready(masked_layer_norm(x_b, mask_b, len_b, eps=eps))
    ref_b = masked_layer_norm_ref(x_b, mask_b, len_b, eps=eps)
    np.testing.assert_allclose(np.asarray(out_b), np.asarray(ref_b),
                               rtol=2e-5, atol=2e-5)

    # --- forced N-tiled two-phase fallback (wide-row / v7x path) --------------
    B3, T3, D3 = 4, 16, 64
    x_c = jax.random.normal(jax.random.PRNGKey(1), (B3, T3, D3), dtype=jnp.float32)
    len_c = jnp.array([16, 9, 12, 4], dtype=jnp.int32)
    mask_c = jnp.arange(T3)[None, :] >= len_c[:, None]
    out_c = jax.block_until_ready(
        masked_layer_norm(x_c, mask_c, len_c, eps=eps,
                          force_two_phase=True, n_block=256))
    ref_c = masked_layer_norm_ref(x_c, mask_c, len_c, eps=eps)
    np.testing.assert_allclose(np.asarray(out_c), np.asarray(ref_c),
                               rtol=2e-5, atol=2e-5)

    print("KERNEL_OK")
</pallas_src>

<mosaic_0001>
module attributes {stable_mosaic.version = 11 : i64} {
  func.func @_resident_kernel(%arg0: i32, %arg1: memref<2x1xi32, #tpu.memory_space<vmem>>, %arg2: memref<2x256xf32, #tpu.memory_space<vmem>>, %arg3: memref<2x256xf32, #tpu.memory_space<vmem>>) attributes {dimension_semantics = [#tpu.dimension_semantics<parallel>], iteration_bounds = array<i64: 1>, scalar_prefetch = 0 : i64, scratch_operands = 0 : i64, tpu.core_type = #tpu.core_type<tc>, window_params = [{pipeline_mode = #tpu.pipeline_mode<synchronous>, transform_indices = @transform_0, window_bounds = array<i64: 2, 1>}, {transform_indices = @transform_1, window_bounds = array<i64: 2, 256>}, {transform_indices = @transform_2, window_bounds = array<i64: 2, 256>}]} {
    %c0 = arith.constant 0 : index
    %c0_0 = arith.constant 0 : index
    %0 = vector.load %arg1[%c0, %c0_0] : memref<2x1xi32, #tpu.memory_space<vmem>>, vector<2x1xi32>
    %c0_1 = arith.constant 0 : index
    %c0_2 = arith.constant 0 : index
    %1 = vector.load %arg2[%c0_1, %c0_2] : memref<2x256xf32, #tpu.memory_space<vmem>>, vector<2x256xf32>
    %2 = arith.sitofp %0 : vector<2x1xi32> to vector<2x1xf32>
    %cst = arith.constant 1.000000e+00 : f32
    %3 = vector.broadcast %cst : f32 to vector<2x1xf32>
    %4 = arith.maximumf %2, %3 : vector<2x1xf32>
    %5 = tpu.iota {dimensions = array<i32: 1>} : vector<2x256xi32>
    %6 = vector.broadcast %0 : vector<2x1xi32> to vector<2x256xi32>
    %7 = arith.cmpi slt, %5, %6 : vector<2x256xi32>
    %cst_3 = arith.constant 0.000000e+00 : f32
    %8 = vector.broadcast %cst_3 : f32 to vector<2x256xf32>
    %9 = arith.select %7, %1, %8 : vector<2x256xi1>, vector<2x256xf32>
    %cst_4 = arith.constant dense<0.000000e+00> : vector<2xf32>
    %10 = vector.multi_reduction <add>, %9, %cst_4 [1] : vector<2x256xf32> to vector<2xf32>
    %11 = vector.shape_cast %10 : vector<2xf32> to vector<2x1xf32>
    %12 = arith.divf %11, %4 : vector<2x1xf32>
    %13 = vector.broadcast %12 : vector<2x1xf32> to vector<2x256xf32>
    %14 = arith.subf %1, %13 : vector<2x256xf32>
    %15 = arith.mulf %14, %14 : vector<2x256xf32>
    %cst_5 = arith.constant 0.000000e+00 : f32
    %16 = vector.broadcast %cst_5 : f32 to vector<2x256xf32>
    %17 = arith.select %7, %15, %16 : vector<2x256xi1>, vector<2x256xf32>
    %cst_6 = arith.constant dense<0.000000e+00> : vector<2xf32>
    %18 = vector.multi_reduction <add>, %17, %cst_6 [1] : vector<2x256xf32> to vector<2xf32>
    %19 = vector.shape_cast %18 : vector<2xf32> to vector<2x1xf32>
    %20 = arith.divf %19, %4 : vector<2x1xf32>
    %cst_7 = arith.constant 9.99999974E-6 : f32
    %21 = vector.broadcast %cst_7 : f32 to vector<2x1xf32>
    %22 = arith.addf %20, %21 : vector<2x1xf32>
    %23 = math.rsqrt %22 : vector<2x1xf32>
    %24 = vector.broadcast %23 : vector<2x1xf32> to vector<2x256xf32>
    %25 = arith.mulf %14, %24 : vector<2x256xf32>
    %c0_8 = arith.constant 0 : index
    %c0_9 = arith.constant 0 : index
    %26 = vector.load %arg3[%c0_8, %c0_9] : memref<2x256xf32, #tpu.memory_space<vmem>>, vector<2x256xf32>
    tpu.vector_store %arg3[%c0_8, %c0_9], %25 {strides = array<i32>} : memref<2x256xf32, #tpu.memory_space<vmem>>, vector<2x256xf32>,
    return
  }
  func.func @transform_0(%arg0: i32) -> (i32, i32) {
    %c0_i32 = arith.constant 0 : i32
    %c0_i32_0 = arith.constant 0 : i32
    %c0_i32_1 = arith.constant 0 : i32
    return %c0_i32, %c0_i32_0 : i32, i32
  }
  func.func @transform_1(%arg0: i32) -> (i32, i32) {
    %c0_i32 = arith.constant 0 : i32
    %c0_i32_0 = arith.constant 0 : i32
    return %arg0, %c0_i32 : i32, i32
  }
  func.func @transform_2(%arg0: i32) -> (i32, i32) {
    %c0_i32 = arith.constant 0 : i32
    %c0_i32_0 = arith.constant 0 : i32
    return %arg0, %c0_i32 : i32, i32
  }
}

</mosaic_0001>

<llo_original>
// kernel: tpu_custom_call.1
$region0: #{tpu_custom_call.1}
  #allocation0 [shape = 'u32[]', space=smem, size = 0x4, offset = 0x4, fixed_abs, tag = 'smem constant byte address 0x4 - core index']
  #allocation1 [shape = 'u32[144,128]{1,0:T(1,128)}', space=vmem, size = 0x12000, scoped, tag = 'internal scratch']
  %s0 = inlined_call_operand.vmem [shape: s32[2,1], index: 0, kind: input, shape index: {}]
  %s1 = inlined_call_operand.vmem [shape: f32[2,256], index: 1, kind: input, shape index: {}]
  %s2 = inlined_call_operand.hbm [shape: f32[2,256], index: 2, kind: output, shape index: {}]
  %s3 = sld [smem:[#allocation0]]
  $region18: #{tpu_custom_call.1} parent=0
    _
  %s5 = ssub.s32 1, %s3
  %s6 = scalar_select 0, %s5, %s3
  $region1: #{tpu_custom_call.1} parent=0
    #allocation2 [shape = 'u8[2048]{0}', space=vmem, size = 0x800, scoped, tag = 'output window, operand 0, single buffered']
    #allocation3 [shape = 's32[1]{0}', space=sflag, size = 0x4, scoped, tag = 'scoped memory for tpu_custom_call.1']
    %7 = vsyncpa [#allocation3], 0
    // Predicated region
    $region2: #{tpu_custom_call.1} parent=1 // pred_check
      _
    $region3: #{tpu_custom_call.1} parent=1 // pred_check_branch
      %9 = sbr.rel (0) target = $region5
    $region4: #{tpu_custom_call.1} parent=1 // pred_region
      _
    $region5: #{tpu_custom_call.1} parent=1 // pred_fallthru
      _
    // Predicated region
    $region6: #{tpu_custom_call.1} parent=1 // pred_check
      _
    $region7: #{tpu_custom_call.1} parent=1 // pred_check_branch
      %11 = sbr.rel (0) target = $region9
    $region8: #{tpu_custom_call.1} parent=1 // pred_region
      _
    $region9: #{tpu_custom_call.1} parent=1 // pred_fallthru
      _
    %v12 = vld [vmem:[%s0] sm:$0x3]
    %v13 = vld [vmem:[%s1] sm:$0xf]
    %v14 = vcvt.s32.f32 %v12
    %v15 = vmax.f32 %v14, 1.0
    %v16 = vlaneseq
    %v17 = vand.u32 %v16, 127
    %v18 = vadd.s32 %v17, 128
    %19 = vset.pattern.permute.xlu0 0
    %20 = vperm.xlu0 %19, %v12
    %v21 = vpop.permute.xlu0 %20
    %vm22 = vcmp.lt.s32.totalorder %v17, %v21
    %vm23 = vcmp.lt.s32.totalorder %v18, %v21
    %v26 = vunpack.c.l.s4 1983009808
    %v27 = vunpack.c.0.s8 %v26
    %v28 = vlaneseq
    %v29 = vshrl.u32 %v28, 7
    %v30 = vsub.s32 %v27, %v29
    %v31 = vrot.slane %v13, %v30
    %v32 = vcombine.high %v31, %v31
    %v35 = vsel %vm22, %v31, 0.0
    %v36 = vsel %vm23, %v32, 0.0
    %vm37 = vcmask 1041408
    %v38 = vsel %vm37, %v35, 0.0
    %v39 = vsel %vm37, %v36, 0.0
    %v40 = vadd.f32 %v38, %v39
    %41 = vadd.xlane.f32.xlu0 %v40
    %v42 = vpop.xlane.xlu0 %41
    %v43 = vrcp.pop %v15
    %v44 = vmul.f32 %v42, %v43
    %46 = vset.pattern.permute.xlu0 0
    %47 = vperm.xlu0 %46, %v44
    %v48 = vpop.permute.xlu0 %47
    %v50 = vunpack.c.l.s4 269488144
    %v51 = vunpack.c.0.s8 %v50
    %v52 = vlaneseq
    %v53 = vshrl.u32 %v52, 7
    %v54 = vsub.s32 %v51, %v53
    %v55 = vrot.slane %v48, %v54
    %v57 = vsub.f32 %v13, %v55
    %v58 = vmul.f32 %v57, %v57
    %v61 = vunpack.c.l.s4 1983009808
    %v62 = vunpack.c.0.s8 %v61
    %v63 = vlaneseq
    %v64 = vshrl.u32 %v63, 7
    %v65 = vsub.s32 %v62, %v64
    %v66 = vrot.slane %v58, %v65
    %v67 = vcombine.high %v66, %v66
    %v70 = vsel %vm22, %v66, 0.0
    %v71 = vsel %vm23, %v67, 0.0
    %v72 = vsel %vm37, %v70, 0.0
    %v73 = vsel %vm37, %v71, 0.0
    %v74 = vadd.f32 %v72, %v73
    %75 = vadd.xlane.f32.xlu0 %v74
    %v76 = vpop.xlane.xlu0 %75
    %v77 = vmul.f32 %v76, %v43
    %v78 = vadd.f32 %v77, 1e-05
    %v79 = vrsqrt.pop %v78
    %81 = vset.pattern.permute.xlu0 0
    %82 = vperm.xlu0 %81, %v79
    %v83 = vpop.permute.xlu0 %82
    %v85 = vunpack.c.l.s4 269488144
    %v86 = vunpack.c.0.s8 %v85
    %v87 = vlaneseq
    %v88 = vshrl.u32 %v87, 7
    %v89 = vsub.s32 %v86, %v88
    %v90 = vrot.slane %v83, %v89
    %v92 = vmul.f32 %v57, %v90
    %93 = vst [vmem:[#allocation2] sm:$0xf] %v92
    // Predicated region
    $region10: #{tpu_custom_call.1} parent=1 // pred_check
      _
    $region11: #{tpu_custom_call.1} parent=1 // pred_check_branch
      %95 = sbr.rel (0) target = $region13
    $region12: #{tpu_custom_call.1} parent=1 // pred_region
      %s97 = ssub.s32 64, 64
      %98 = vsyncadd [#allocation3], %s97
      %s100 = sshll.u32 [#allocation2], 4
      %s101 = int_to_ptr.vmem [resolvable:$true] %s100
      %103 = dma.vmem_to_hbm [thread:$0]  %s101, 64, %s2, [#allocation3]
    $region13: #{tpu_custom_call.1} parent=1 // pred_fallthru
      _
    // Predicated region
    $region14: #{tpu_custom_call.1} parent=1 // pred_check
      _
    $region15: #{tpu_custom_call.1} parent=1 // pred_check_branch
      %105 = sbr.rel (0) target = $region17
    $region16: #{tpu_custom_call.1} parent=1 // pred_region
      %106 = dma.done [#allocation3], 64
    $region17: #{tpu_custom_call.1} parent=1 // pred_fallthru
      _
    %107 = vsyncpa [#allocation3], 1

</llo_original>
